<compile_context>
chip_gen: v7x
topology: tpu7x:2x2x1
jax: 0.10.0
libtpu: 0.0.40
codegen_flags: <defaults>
</compile_context>

<pallas_src>
import jax
import jax.numpy as jnp
from jax.experimental import pallas as pl
from jax.experimental.pallas import tpu as pltpu

EPS = 1e-2            # EmpiricalNormalization default eps
CLIP = 10.0           # config clip_threshold=10
UNTIL = 1e8           # config until=100000000.0

_VMEM_LIMIT = 32 * 1024 * 1024          # explicit scoped-VMEM limit
_DEFAULT_FUSED_BUDGET = 8 * 1024 * 1024  # fused train path if batch <= this
_ROW_BLOCK_TARGET = 2 * 1024 * 1024      # ~2 MiB tiles for the tiled paths


# ----------------------------------------------------------------------------
# Helpers
# ----------------------------------------------------------------------------
def _pick_row_block(num_rows, feat, itemsize, target_bytes=_ROW_BLOCK_TARGET):
    """Largest row-chunk that (a) fits ~target_bytes, (b) is a multiple of 8
    dividing num_rows — or the full extent (always a legal block)."""
    if num_rows * feat * itemsize <= target_bytes:
        return num_rows
    max_rows = max(8, target_bytes // (feat * itemsize))
    r = (max_rows // 8) * 8
    while r >= 8:
        if num_rows % r == 0:
            return r
        r -= 8
    return num_rows  # fallback: single full-extent block


# ----------------------------------------------------------------------------
# Pallas kernels (all operate on lane-dense 2-D slabs: (rows, S*P))
# ----------------------------------------------------------------------------
def _normalize_kernel(x_ref, mean_ref, inv_scale_ref, o_ref):
    # y = clip((x - mean) * inv_scale); mean / inv_scale are (1, D) rows.
    x = x_ref[...].astype(jnp.float32)
    y = (x - mean_ref[...]) * inv_scale_ref[...]
    o_ref[...] = jnp.clip(y, -CLIP, CLIP).astype(o_ref.dtype)


def _denormalize_kernel(y_ref, mean_ref, scale_ref, o_ref):
    # x = y * (std + eps) + mean
    y = y_ref[...].astype(jnp.float32)
    o_ref[...] = (y * scale_ref[...] + mean_ref[...]).astype(o_ref.dtype)


def _stats_kernel(x_ref, sum_ref, sumsq_ref):
    # Single-pass accumulation of sum and sum-of-squares over the row axis,
    # tiled over the batch with an accumulating (resident) output block.
    @pl.when(pl.program_id(0) == 0)
    def _():
        sum_ref[...] = jnp.zeros_like(sum_ref)
        sumsq_ref[...] = jnp.zeros_like(sumsq_ref)

    x = x_ref[...].astype(jnp.float32)
    sum_ref[...] += jnp.sum(x, axis=0, keepdims=True)
    sumsq_ref[...] += jnp.sum(x * x, axis=0, keepdims=True)


def _fused_train_norm_kernel(x_ref, mean_ref, var_ref, rate_ref,
                             o_ref, new_mean_ref, new_var_ref):
    # Fused training path: one read of x -> batch stats (single pass),
    # running-stat update, and normalization with the UPDATED stats.
    x = x_ref[...].astype(jnp.float32)                 # (B, D)
    inv_b = 1.0 / x.shape[0]
    s = jnp.sum(x, axis=0, keepdims=True)
    ss = jnp.sum(x * x, axis=0, keepdims=True)
    mean_x = s * inv_b
    var_x = jnp.maximum(ss * inv_b - mean_x * mean_x, 0.0)

    rate = rate_ref[0]                                 # SMEM scalar
    mean_old = mean_ref[...]
    var_old = var_ref[...]
    delta = mean_x - mean_old
    new_mean = mean_old + rate * delta
    new_var = var_old + rate * (var_x - var_old + delta * (mean_x - new_mean))

    inv_scale = 1.0 / (jnp.sqrt(new_var) + EPS)        # tiny (1, D) row
    o_ref[...] = jnp.clip((x - new_mean) * inv_scale, -CLIP, CLIP).astype(o_ref.dtype)
    new_mean_ref[...] = new_mean
    new_var_ref[...] = new_var


# ----------------------------------------------------------------------------
# pallas_call wrappers
# ----------------------------------------------------------------------------
def _affine_call(kernel, x2d, a2d, b2d):
    rows, feat = x2d.shape
    bt = _pick_row_block(rows, feat, x2d.dtype.itemsize)
    grid = (rows // bt,)
    return pl.pallas_call(
        kernel,
        out_shape=jax.ShapeDtypeStruct((rows, feat), x2d.dtype),
        grid=grid,
        in_specs=[
            pl.BlockSpec((bt, feat), lambda i: (i, 0)),
            pl.BlockSpec((1, feat), lambda i: (0, 0)),
            pl.BlockSpec((1, feat), lambda i: (0, 0)),
        ],
        out_specs=pl.BlockSpec((bt, feat), lambda i: (i, 0)),
        compiler_params=pltpu.CompilerParams(
            dimension_semantics=("parallel",),
            vmem_limit_bytes=_VMEM_LIMIT),
    )(x2d, a2d, b2d)


def normalize_pallas(value2d, mean2d, inv_scale2d):
    return _affine_call(_normalize_kernel, value2d, mean2d, inv_scale2d)


def denormalize_pallas(pred2d, mean2d, scale2d):
    return _affine_call(_denormalize_kernel, pred2d, mean2d, scale2d)


def batch_stats_pallas(value2d):
    """Tiled single-pass batch mean / (biased) variance over the row axis."""
    rows, feat = value2d.shape
    bt = _pick_row_block(rows, feat, value2d.dtype.itemsize)
    nc = rows // bt
    s, ss = pl.pallas_call(
        _stats_kernel,
        out_shape=(jax.ShapeDtypeStruct((1, feat), jnp.float32),
                   jax.ShapeDtypeStruct((1, feat), jnp.float32)),
        grid=(nc,),
        in_specs=[pl.BlockSpec((bt, feat), lambda i: (i, 0))],
        out_specs=(pl.BlockSpec((1, feat), lambda i: (0, 0)),
                   pl.BlockSpec((1, feat), lambda i: (0, 0))),
        compiler_params=pltpu.CompilerParams(
            dimension_semantics=("arbitrary",),
            vmem_limit_bytes=_VMEM_LIMIT),
    )(value2d)
    inv_b = 1.0 / rows
    mean = s * inv_b
    var = jnp.maximum(ss * inv_b - mean * mean, 0.0)
    return mean, var


def fused_train_normalize_pallas(value2d, mean2d, var2d, rate):
    """One pallas_call: read value once -> normalized output + updated stats."""
    rows, feat = value2d.shape
    rate_arr = jnp.asarray([rate], jnp.float32)
    return pl.pallas_call(
        _fused_train_norm_kernel,
        out_shape=(jax.ShapeDtypeStruct((rows, feat), value2d.dtype),
                   jax.ShapeDtypeStruct((1, feat), jnp.float32),
                   jax.ShapeDtypeStruct((1, feat), jnp.float32)),
        in_specs=[
            pl.BlockSpec(memory_space=pltpu.MemorySpace.VMEM),
            pl.BlockSpec(memory_space=pltpu.MemorySpace.VMEM),
            pl.BlockSpec(memory_space=pltpu.MemorySpace.VMEM),
            pl.BlockSpec(memory_space=pltpu.MemorySpace.SMEM),
        ],
        out_specs=(pl.BlockSpec(memory_space=pltpu.MemorySpace.VMEM),
                   pl.BlockSpec(memory_space=pltpu.MemorySpace.VMEM),
                   pl.BlockSpec(memory_space=pltpu.MemorySpace.VMEM)),
        compiler_params=pltpu.CompilerParams(vmem_limit_bytes=_VMEM_LIMIT),
    )(value2d, mean2d, var2d, rate_arr)


# ----------------------------------------------------------------------------
# JAX port of the Model base class (concrete methods only)
# ----------------------------------------------------------------------------
class PallasDecoderBase:
    def __init__(self, config):
        if not isinstance(config, dict):
            raise ValueError("Config must be a dict.")
        self.config = config
        self.input_size = config["input_size"]
        self.priv_size = config["priv_size"]
        self.hidden_to_pred_shape = config["hidden_to_pred_shape"]
        self.hidden_to_gate_shape = config["hidden_to_gate_shape"]
        self.gate_to_pred_shape = config["gate_to_pred_shape"]
        self.hidden_size = config["hidden_size"]
        self.num_rnn_layers = config["num_rnn_layers"]
        self.seq_length = config["seq_length"]
        self.input_slice = config["input_slice"]
        self.reset_hidden = config.get("reset_hidden_each_epoch", True)
        self.norm = config.get("norm", False)
        self._fused_budget = config.get("fused_vmem_budget_bytes",
                                        _DEFAULT_FUSED_BUDGET)

        if self.norm:
            # EmpiricalNormalization([seq_length, priv_size]) state
            # (mean=0, var=1, count=0), stored lane-dense as (1, S*P).
            # NOTE: _count/_mean/_var are Python-side mutable state, matching
            # the stateful torch normalizer; the training path is not jit-able.
            feat = self.seq_length * self.priv_size
            self._feat = feat
            self._mean2d = jnp.zeros((1, feat), jnp.float32)
            self._var2d = jnp.ones((1, feat), jnp.float32)
            self._count = 0
            self._refresh_scale()

    # ---- forward / predict are abstract in the PyTorch base class ----------
    def forward(self, x):
        # TODO(synk): base class raises NotImplementedError; no forward graph to port.
        raise NotImplementedError

    def predict(self, x):
        raise NotImplementedError

    # ---- EmpiricalNormalization ---------------------------------------------
    def _refresh_scale(self):
        # Precompute (std + eps) and its reciprocal ONCE per stats update, so
        # the per-call kernels are pure FMA (no per-element division / sqrt).
        scale = jnp.sqrt(self._var2d) + EPS
        self._scale2d = scale
        self._inv_scale2d = 1.0 / scale

    def normalize(self, value, is_training):
        if not self.norm:
            return value
        B, S, P = value.shape
        v2 = value.reshape(B, S * P)                    # lane-dense slab

        if is_training and self._count < UNTIL:
            count_x = B
            new_count = self._count + count_x
            rate = float(count_x) / float(new_count)

            if v2.size * v2.dtype.itemsize <= self._fused_budget:
                # Fused: single HBM read of value, single pallas_call.
                out2, new_mean, new_var = fused_train_normalize_pallas(
                    v2, self._mean2d, self._var2d, rate)
                self._mean2d, self._var2d = new_mean, new_var
                self._count = new_count
                self._refresh_scale()
                return out2.reshape(B, S, P)

            # Large-batch path: tiled single-pass stats (accumulator grid),
            # tiny running-stat combine, then tiled normalize with the
            # UPDATED stats (matches torch EmpiricalNormalization semantics).
            mean_x, var_x = batch_stats_pallas(v2)
            delta = mean_x - self._mean2d
            new_mean = self._mean2d + rate * delta
            self._var2d = self._var2d + rate * (var_x - self._var2d
                                                + delta * (mean_x - new_mean))
            self._mean2d = new_mean
            self._count = new_count
            self._refresh_scale()

        out2 = normalize_pallas(v2, self._mean2d, self._inv_scale2d)
        return out2.reshape(B, S, P)

    def denormalize(self, pred):
        if not self.norm:
            return pred
        B, S, P = pred.shape
        out2 = denormalize_pallas(pred.reshape(B, S * P),
                                  self._mean2d, self._scale2d)
        return out2.reshape(B, S, P)

    # ---- hidden state -------------------------------------------------------
    def init_hidden(self, batch_size):
        return jnp.zeros((self.num_rnn_layers, batch_size, self.hidden_size),
                         jnp.float32)

    # TODO(synk): save()/load() are torch state-dict file I/O; no Pallas equivalent.


# ----------------------------------------------------------------------------
# Demo
# ----------------------------------------------------------------------------
if __name__ == "__main__":
    config = {
        "input_size": 32,
        "priv_size": 16,
        "hidden_to_pred_shape": [32],
        "hidden_to_gate_shape": [32],
        "gate_to_pred_shape": [32],
        "hidden_size": 32,
        "num_rnn_layers": 2,
        "seq_length": 8,
        "input_slice": [0, 32],
        "norm": True,
        "activation_fn": "LeakyReLU",
    }

    model = PallasDecoderBase(config)

    key = jax.random.PRNGKey(0)
    B = 4
    value = jax.random.normal(
        key, (B, config["seq_length"], config["priv_size"]),
        dtype=jnp.float32) * 3.0

    h0 = model.init_hidden(B)

    y_train = model.normalize(value, is_training=True)   # fused stats+normalize
    y_val = model.normalize(value, is_training=False)    # normalize only
    recon = model.denormalize(y_val)                      # inverse transform
    jax.block_until_ready((h0, y_train, y_val, recon))

    # ---- reference checks ---------------------------------------------------
    # With count=0 -> rate=1, the updated running stats equal the batch stats.
    mean_x = jnp.mean(value, axis=0)
    var_x = jnp.mean((value - mean_x) ** 2, axis=0)
    y_ref = jnp.clip((value - mean_x) / (jnp.sqrt(var_x) + EPS), -CLIP, CLIP)

    err_train = float(jnp.max(jnp.abs(y_train - y_ref)))
    assert err_train < 1e-3, f"fused training normalize mismatch: {err_train}"

    err_val = float(jnp.max(jnp.abs(y_val - y_ref)))
    assert err_val < 1e-3, f"validation normalize mismatch: {err_val}"

    # denormalize(normalize(x)) ~= x where no clipping occurred
    mask = jnp.abs(y_val) < CLIP
    err_rt = float(jnp.max(jnp.abs(jnp.where(mask, recon - value, 0.0))))
    assert err_rt < 1e-3, f"round-trip error too large: {err_rt}"

    # Exercise the tiled (non-fused) training path and check agreement.
    cfg2 = dict(config)
    cfg2["fused_vmem_budget_bytes"] = 0
    model2 = PallasDecoderBase(cfg2)
    y_train2 = model2.normalize(value, is_training=True)
    jax.block_until_ready(y_train2)
    err_tiled = float(jnp.max(jnp.abs(y_train2 - y_train)))
    assert err_tiled < 1e-3, f"tiled training path mismatch: {err_tiled}"

    assert h0.shape == (config["num_rnn_layers"], B, config["hidden_size"])

    print("KERNEL_OK")
</pallas_src>

<mosaic_0001>
module attributes {stable_mosaic.version = 11 : i64} {
  func.func @_fused_train_norm_kernel(%arg0: memref<4x128xf32, #tpu.memory_space<vmem>>, %arg1: memref<1x128xf32, #tpu.memory_space<vmem>>, %arg2: memref<1x128xf32, #tpu.memory_space<vmem>>, %arg3: memref<1xf32, #tpu.memory_space<smem>>, %arg4: memref<4x128xf32, #tpu.memory_space<vmem>>, %arg5: memref<1x128xf32, #tpu.memory_space<vmem>>, %arg6: memref<1x128xf32, #tpu.memory_space<vmem>>) attributes {dimension_semantics = [], scalar_prefetch = 0 : i64, scratch_operands = 0 : i64, tpu.core_type = #tpu.core_type<tc>} {
    %c0 = arith.constant 0 : index
    %c0_0 = arith.constant 0 : index
    %0 = vector.load %arg0[%c0, %c0_0] : memref<4x128xf32, #tpu.memory_space<vmem>>, vector<4x128xf32>
    %cst = arith.constant dense<0.000000e+00> : vector<128xf32>
    %1 = vector.multi_reduction <add>, %0, %cst [0] : vector<4x128xf32> to vector<128xf32>
    %2 = vector.shape_cast %1 : vector<128xf32> to vector<1x128xf32>
    %3 = arith.mulf %0, %0 : vector<4x128xf32>
    %cst_1 = arith.constant dense<0.000000e+00> : vector<128xf32>
    %4 = vector.multi_reduction <add>, %3, %cst_1 [0] : vector<4x128xf32> to vector<128xf32>
    %5 = vector.shape_cast %4 : vector<128xf32> to vector<1x128xf32>
    %cst_2 = arith.constant 2.500000e-01 : f32
    %6 = vector.broadcast %cst_2 : f32 to vector<1x128xf32>
    %7 = arith.mulf %2, %6 : vector<1x128xf32>
    %cst_3 = arith.constant 2.500000e-01 : f32
    %8 = vector.broadcast %cst_3 : f32 to vector<1x128xf32>
    %9 = arith.mulf %5, %8 : vector<1x128xf32>
    %10 = arith.mulf %7, %7 : vector<1x128xf32>
    %11 = arith.subf %9, %10 : vector<1x128xf32>
    %cst_4 = arith.constant 0.000000e+00 : f32
    %12 = vector.broadcast %cst_4 : f32 to vector<1x128xf32>
    %13 = arith.maximumf %11, %12 : vector<1x128xf32>
    %c0_5 = arith.constant 0 : index
    %14 = memref.load %arg3[%c0_5] : memref<1xf32, #tpu.memory_space<smem>>
    %c0_6 = arith.constant 0 : index
    %c0_7 = arith.constant 0 : index
    %15 = vector.load %arg1[%c0_6, %c0_7] : memref<1x128xf32, #tpu.memory_space<vmem>>, vector<1x128xf32>
    %c0_8 = arith.constant 0 : index
    %c0_9 = arith.constant 0 : index
    %16 = vector.load %arg2[%c0_8, %c0_9] : memref<1x128xf32, #tpu.memory_space<vmem>>, vector<1x128xf32>
    %17 = arith.subf %7, %15 : vector<1x128xf32>
    %18 = vector.broadcast %14 : f32 to vector<1x128xf32>
    %19 = arith.mulf %18, %17 : vector<1x128xf32>
    %20 = arith.addf %15, %19 : vector<1x128xf32>
    %21 = arith.subf %13, %16 : vector<1x128xf32>
    %22 = arith.subf %7, %20 : vector<1x128xf32>
    %23 = arith.mulf %17, %22 : vector<1x128xf32>
    %24 = arith.addf %21, %23 : vector<1x128xf32>
    %25 = vector.broadcast %14 : f32 to vector<1x128xf32>
    %26 = arith.mulf %25, %24 : vector<1x128xf32>
    %27 = arith.addf %16, %26 : vector<1x128xf32>
    %28 = math.sqrt %27 : vector<1x128xf32>
    %cst_10 = arith.constant 0.00999999977 : f32
    %29 = vector.broadcast %cst_10 : f32 to vector<1x128xf32>
    %30 = arith.addf %28, %29 : vector<1x128xf32>
    %cst_11 = arith.constant 1.000000e+00 : f32
    %31 = vector.broadcast %cst_11 : f32 to vector<1x128xf32>
    %32 = arith.divf %31, %30 : vector<1x128xf32>
    %33 = vector.broadcast %20 : vector<1x128xf32> to vector<4x128xf32>
    %34 = arith.subf %0, %33 : vector<4x128xf32>
    %35 = vector.broadcast %32 : vector<1x128xf32> to vector<4x128xf32>
    %36 = arith.mulf %34, %35 : vector<4x128xf32>
    %cst_12 = arith.constant -1.000000e+01 : f32
    %cst_13 = arith.constant 1.000000e+01 : f32
    %37 = vector.broadcast %cst_12 : f32 to vector<4x128xf32>
    %38 = arith.maximumf %37, %36 : vector<4x128xf32>
    %39 = vector.broadcast %cst_13 : f32 to vector<4x128xf32>
    %40 = arith.minimumf %39, %38 : vector<4x128xf32>
    %c0_14 = arith.constant 0 : index
    %c0_15 = arith.constant 0 : index
    %41 = vector.load %arg4[%c0_14, %c0_15] : memref<4x128xf32, #tpu.memory_space<vmem>>, vector<4x128xf32>
    tpu.vector_store %arg4[%c0_14, %c0_15], %40 {strides = array<i32>} : memref<4x128xf32, #tpu.memory_space<vmem>>, vector<4x128xf32>,
    %c0_16 = arith.constant 0 : index
    %c0_17 = arith.constant 0 : index
    %42 = vector.load %arg5[%c0_16, %c0_17] : memref<1x128xf32, #tpu.memory_space<vmem>>, vector<1x128xf32>
    tpu.vector_store %arg5[%c0_16, %c0_17], %20 {strides = array<i32>} : memref<1x128xf32, #tpu.memory_space<vmem>>, vector<1x128xf32>,
    %c0_18 = arith.constant 0 : index
    %c0_19 = arith.constant 0 : index
    %43 = vector.load %arg6[%c0_18, %c0_19] : memref<1x128xf32, #tpu.memory_space<vmem>>, vector<1x128xf32>
    tpu.vector_store %arg6[%c0_18, %c0_19], %27 {strides = array<i32>} : memref<1x128xf32, #tpu.memory_space<vmem>>, vector<1x128xf32>,
    return
  }
}

</mosaic_0001>

<llo_original>
// kernel: tpu_custom_call.1
$region0: #{tpu_custom_call.1}
  #allocation0 [shape = 'u32[]', space=smem, size = 0x4, offset = 0x4, fixed_abs, tag = 'smem constant byte address 0x4 - core index']
  #allocation1 [shape = 'u32[144,128]{1,0:T(1,128)}', space=vmem, size = 0x12000, scoped, tag = 'internal scratch']
  #allocation2 [shape = 'f32[1]{0:T(128)S(6)}', space=smem, size = 0x200, scoped, tag = 'scoped memory for tpu_custom_call.1']
  %s0 = inlined_call_operand.hbm [shape: f32[4,128], index: 0, kind: input, shape index: {}]
  %s1 = inlined_call_operand.vmem [shape: f32[1,128], index: 1, kind: input, shape index: {}]
  %s2 = inlined_call_operand.vmem [shape: f32[1,128], index: 2, kind: input, shape index: {}]
  %s3 = inlined_call_operand.<no memory space> [shape: f32[1], index: 3, kind: input, shape index: {}]
  %s4 = inlined_call_operand.hbm [shape: f32[4,128], index: 4, kind: output, shape index: {0}]
  %s5 = inlined_call_operand.hbm [shape: f32[1,128], index: 5, kind: output, shape index: {1}]
  %s6 = inlined_call_operand.hbm [shape: f32[1,128], index: 6, kind: output, shape index: {2}]
  %7 = xla_tuple %s4, %s5, %s6
  %s8 = sld [smem:[#allocation0]]
  $region46: #{tpu_custom_call.1} parent=0
    _
  %s10 = ssub.s32 1, %s8
  %s11 = scalar_select 0, %s10, %s8
  %12 = sst [smem:[#allocation2]] %s3
  $region1: #{tpu_custom_call.1} parent=0
    #allocation3 [shape = 'u8[2048]{0}', space=vmem, size = 0x800, scoped, tag = 'input window, operand 0, single buffered']
    #allocation4 [shape = 's32[1]{0}', space=sflag, size = 0x4, scoped, tag = 'scoped memory for tpu_custom_call.1']
    #allocation5 [shape = 's32[1]{0}', space=sflag, size = 0x4, scoped, tag = 'scoped memory for tpu_custom_call.1']
    #allocation6 [shape = 'u8[2048]{0}', space=vmem, size = 0x800, scoped, tag = 'output window, operand 0, single buffered']
    #allocation7 [shape = 'u8[512]{0}', space=vmem, size = 0x400, scoped, tag = 'output window, operand 1, single buffered']
    #allocation8 [shape = 's32[1]{0}', space=sflag, size = 0x4, scoped, tag = 'scoped memory for tpu_custom_call.1']
    #allocation9 [shape = 'u8[512]{0}', space=vmem, size = 0x400, scoped, tag = 'output window, operand 2, single buffered']
    %13 = vsyncpa [#allocation4], 0
    %14 = vsyncpa [#allocation5], 0
    %15 = vsyncpa [#allocation8], 0
    // Predicated region
    $region2: #{tpu_custom_call.1} parent=1 // pred_check
      _
    $region3: #{tpu_custom_call.1} parent=1 // pred_check_branch
      %17 = sbr.rel (0) target = $region5
    $region4: #{tpu_custom_call.1} parent=1 // pred_region
      %s19 = ssub.s32 64, 64
      %20 = vsyncadd [#allocation4], %s19
      %s22 = sshll.u32 [#allocation3], 4
      %s23 = int_to_ptr.vmem [resolvable:$true] %s22
      %25 = dma.hbm_to_vmem [thread:$0]  %s0, 64, %s23, [#allocation4]
    $region5: #{tpu_custom_call.1} parent=1 // pred_fallthru
      _
    // Predicated region
    $region6: #{tpu_custom_call.1} parent=1 // pred_check
      _
    $region7: #{tpu_custom_call.1} parent=1 // pred_check_branch
      %27 = sbr.rel (0) target = $region9
    $region8: #{tpu_custom_call.1} parent=1 // pred_region
      _
    $region9: #{tpu_custom_call.1} parent=1 // pred_fallthru
      _
    // Predicated region
    $region10: #{tpu_custom_call.1} parent=1 // pred_check
      _
    $region11: #{tpu_custom_call.1} parent=1 // pred_check_branch
      %29 = sbr.rel (0) target = $region13
    $region12: #{tpu_custom_call.1} parent=1 // pred_region
      _
    $region13: #{tpu_custom_call.1} parent=1 // pred_fallthru
      _
    // Predicated region
    $region14: #{tpu_custom_call.1} parent=1 // pred_check
      _
    $region15: #{tpu_custom_call.1} parent=1 // pred_check_branch
      %31 = sbr.rel (0) target = $region17
    $region16: #{tpu_custom_call.1} parent=1 // pred_region
      _
    $region17: #{tpu_custom_call.1} parent=1 // pred_fallthru
      _
    // Predicated region
    $region18: #{tpu_custom_call.1} parent=1 // pred_check
      _
    $region19: #{tpu_custom_call.1} parent=1 // pred_check_branch
      %33 = sbr.rel (0) target = $region21
    $region20: #{tpu_custom_call.1} parent=1 // pred_region
      %34 = dma.done [#allocation4], 64
    $region21: #{tpu_custom_call.1} parent=1 // pred_fallthru
      _
    %v35 = vld [vmem:[#allocation3] sm:$0xf]
    %vm36 = vcmask 1043456
    %v37 = vsel %vm36, %v35, 0.0
    %v38 = vrot.slane %v37, 4
    %v39 = vadd.f32 %v37, %v38
    %v40 = vrot.slane %v39, 2
    %v41 = vadd.f32 %v39, %v40
    %v42 = vrot.slane %v41, 1
    %v43 = vadd.f32 %v41, %v42
    %v44 = vmul.f32 %v35, %v35
    %v45 = vsel %vm36, %v44, 0.0
    %v46 = vrot.slane %v45, 4
    %v47 = vadd.f32 %v45, %v46
    %v48 = vrot.slane %v47, 2
    %v49 = vadd.f32 %v47, %v48
    %v50 = vrot.slane %v49, 1
    %v51 = vadd.f32 %v49, %v50
    %v52 = vmul.f32 %v43, 0.25
    %v53 = vmul.f32 %v51, 0.25
    %v54 = vmul.f32 %v52, %v52
    %v55 = vsub.f32 %v53, %v54
    %v56 = vmax.f32 %v55, 0.0
    %s57 = sld [smem:[#allocation2]]
    %v58 = vld [vmem:[%s1] sm:$0x1]
    %v59 = vld [vmem:[%s2] sm:$0x1]
    %v60 = vsub.f32 %v52, %v58
    %v61 = vstv %s57
    %v62 = vmul.f32 %v61, %v60
    %v63 = vadd.f32 %v58, %v62
    %v64 = vsub.f32 %v56, %v59
    %v65 = vsub.f32 %v52, %v63
    %v66 = vmul.f32 %v60, %v65
    %v67 = vadd.f32 %v64, %v66
    %v68 = vmul.f32 %v61, %v67
    %v69 = vadd.f32 %v59, %v68
    %v70 = vrsqrt.pop %v69
    %v71 = vmul.f32 %v69, %v70
    %vm72 = vcmp.eq.f32.partialorder %v69, inf
    %v73 = vsel %vm72, %v69, %v71
    %vm74 = vcmp.eq.f32.partialorder %v69, 0.0
    %v75 = vand.u32 %v69, 2147483648
    %v76 = vsel %vm74, %v75, %v73
    %v77 = vadd.f32 %v76, 0.01
    %v78 = vrcp.pop %v77
    %v79 = vmul.f32 1.0, %v78
    %v81 = vlaneseq
    %v82 = vshrl.u32 %v81, 7
    %v83 = vsub.s32 0, %v82
    %v84 = vrot.slane %v63, %v83
    %v86 = vsub.f32 %v35, %v84
    %v88 = vlaneseq
    %v89 = vshrl.u32 %v88, 7
    %v90 = vsub.s32 0, %v89
    %v91 = vrot.slane %v79, %v90
    %v93 = vmul.f32 %v86, %v91
    %v94 = vmax.f32 %v93, -10.0
    %v95 = vmin.f32 %v94, 10.0
    %96 = vst [vmem:[#allocation6] sm:$0xf] %v95
    %97 = vst [vmem:[#allocation7] sm:$0x1] %v63
    %98 = vst [vmem:[#allocation9] sm:$0x1] %v69
    // Predicated region
    $region22: #{tpu_custom_call.1} parent=1 // pred_check
      _
    $region23: #{tpu_custom_call.1} parent=1 // pred_check_branch
      %100 = sbr.rel (0) target = $region25
    $region24: #{tpu_custom_call.1} parent=1 // pred_region
      %s102 = ssub.s32 64, 64
      %103 = vsyncadd [#allocation5], %s102
      %s105 = sshll.u32 [#allocation6], 4
      %s106 = int_to_ptr.vmem [resolvable:$true] %s105
      %108 = dma.vmem_to_hbm [thread:$0]  %s106, 64, %s4, [#allocation5]
    $region25: #{tpu_custom_call.1} parent=1 // pred_fallthru
      _
    // Predicated region
    $region26: #{tpu_custom_call.1} parent=1 // pred_check
      _
    $region27: #{tpu_custom_call.1} parent=1 // pred_check_branch
      %110 = sbr.rel (0) target = $region29
    $region28: #{tpu_custom_call.1} parent=1 // pred_region
      %s112 = ssub.s32 16, 16
      %113 = vsyncadd [#allocation8], %s112
      %s115 = sshll.u32 [#allocation7], 4
      %s116 = int_to_ptr.vmem [resolvable:$true] %s115
      %118 = dma.vmem_to_hbm [thread:$0]  %s116, 16, %s5, [#allocation8]
    $region29: #{tpu_custom_call.1} parent=1 // pred_fallthru
      _
    // Predicated region
    $region30: #{tpu_custom_call.1} parent=1 // pred_check
      _
    $region31: #{tpu_custom_call.1} parent=1 // pred_check_branch
      %120 = sbr.rel (0) target = $region33
    $region32: #{tpu_custom_call.1} parent=1 // pred_region
      %s122 = ssub.s32 16, 16
      %123 = vsyncadd [#allocation8], %s122
      %s125 = sshll.u32 [#allocation9], 4
      %s126 = int_to_ptr.vmem [resolvable:$true] %s125
      %128 = dma.vmem_to_hbm [thread:$0]  %s126, 16, %s6, [#allocation8]
    $region33: #{tpu_custom_call.1} parent=1 // pred_fallthru
      _
    // Predicated region
    $region34: #{tpu_custom_call.1} parent=1 // pred_check
      _
    $region35: #{tpu_custom_call.1} parent=1 // pred_check_branch
      %130 = sbr.rel (0) target = $region37
    $region36: #{tpu_custom_call.1} parent=1 // pred_region
      %131 = dma.done [#allocation5], 64
    $region37: #{tpu_custom_call.1} parent=1 // pred_fallthru
      _
    // Predicated region
    $region38: #{tpu_custom_call.1} parent=1 // pred_check
      _
    $region39: #{tpu_custom_call.1} parent=1 // pred_check_branch
      %133 = sbr.rel (0) target = $region41
    $region40: #{tpu_custom_call.1} parent=1 // pred_region
      %134 = dma.done [#allocation8], 16
    $region41: #{tpu_custom_call.1} parent=1 // pred_fallthru
      _
    // Predicated region
    $region42: #{tpu_custom_call.1} parent=1 // pred_check
      _
    $region43: #{tpu_custom_call.1} parent=1 // pred_check_branch
      %136 = sbr.rel (0) target = $region45
    $region44: #{tpu_custom_call.1} parent=1 // pred_region
      %137 = dma.done [#allocation8], 16
    $region45: #{tpu_custom_call.1} parent=1 // pred_fallthru
      _
    %138 = vsyncpa [#allocation4], 1
    %139 = vsyncpa [#allocation5], 1
    %140 = vsyncpa [#allocation8], 1

</llo_original>
